<compile_context>
chip_gen: v7x
topology: tpu7x:2x2x1
jax: 0.10.0
libtpu: 0.0.40
codegen_flags: <defaults>
</compile_context>

<pallas_src>
import jax
import jax.numpy as jnp
from jax.experimental import pallas as pl
from jax.experimental.pallas import tpu as pltpu

LANE = 128
SUBLANE = 8


def _ceil_to(x, m):
    return ((x + m - 1) // m) * m


def mlp_kernel(x_ref,
               w1_ref, b1_ref,
               w2_ref, b2_ref,
               w3_ref, b3_ref,
               w4_ref, b4_ref,
               o_ref):
    x = x_ref[...]

    # Read biases once per tile (hoisted broadcast).
    b1 = b1_ref[...]
    b2 = b2_ref[...]
    b3 = b3_ref[...]
    b4 = b4_ref[...]

    # Layer 1: Linear + (Dropout: identity in eval) + ReLU
    h = jnp.dot(x, w1_ref[...], preferred_element_type=jnp.float32) + b1
    h = jnp.maximum(h, 0.0)

    # Layer 2: Linear + ReLU
    h = jnp.dot(h, w2_ref[...], preferred_element_type=jnp.float32) + b2
    h = jnp.maximum(h, 0.0)

    # Layer 3: Linear + ReLU
    h = jnp.dot(h, w3_ref[...], preferred_element_type=jnp.float32) + b3
    h = jnp.maximum(h, 0.0)

    # Layer 4: Linear + Sigmoid (exp + approx reciprocal -> both on EUP)
    z = jnp.dot(h, w4_ref[...], preferred_element_type=jnp.float32) + b4
    o_ref[...] = pl.reciprocal(1.0 + jnp.exp(-z), approx=True)


def pad_params(params):
    """Zero-pad every layer's in/out feature dims up to a 128-lane multiple."""
    padded = []
    for (w, b) in params:
        d_in, d_out = w.shape
        pi, po = _ceil_to(d_in, LANE), _ceil_to(d_out, LANE)
        wp = jnp.zeros((pi, po), jnp.float32).at[:d_in, :d_out].set(w)
        bp = jnp.zeros((1, po), jnp.float32).at[:, :d_out].set(b)
        padded.append((wp, bp))
    return padded


def mlp_forward(x, params, *, tm=512):
    """Run the 4-layer MLP forward pass with a batch-tiled Pallas kernel."""
    batch, word_dim = x.shape
    num_class = params[-1][0].shape[1]

    padded = pad_params(params)
    d_in_p = padded[0][0].shape[0]
    n_out_p = padded[-1][0].shape[1]

    # Batch tile: multiple of 8 sublanes, no larger than the (padded) batch.
    tm_eff = _ceil_to(min(tm, _ceil_to(batch, SUBLANE)), SUBLANE)
    batch_p = _ceil_to(batch, tm_eff)

    # Zero-pad x in both batch (to a tile multiple) and feature (to 128 lanes).
    x_p = jnp.zeros((batch_p, d_in_p), jnp.float32).at[:batch, :word_dim].set(x)

    grid = (batch_p // tm_eff,)

    x_spec = pl.BlockSpec((tm_eff, d_in_p), lambda i: (i, 0))
    out_spec = pl.BlockSpec((tm_eff, n_out_p), lambda i: (i, 0))

    # Weights/biases: full-array blocks, constant index_map -> VMEM-resident,
    # not re-DMA'd per grid step.
    wb_specs = []
    flat_wb = []
    for (w, b) in padded:
        wb_specs.append(pl.BlockSpec(w.shape, lambda i: (0, 0)))
        wb_specs.append(pl.BlockSpec(b.shape, lambda i: (0, 0)))
        flat_wb.extend([w, b])

    out_p = pl.pallas_call(
        mlp_kernel,
        out_shape=jax.ShapeDtypeStruct((batch_p, n_out_p), jnp.float32),
        grid=grid,
        in_specs=[x_spec] + wb_specs,
        out_specs=out_spec,
        compiler_params=pltpu.CompilerParams(
            dimension_semantics=("parallel",),
            vmem_limit_bytes=32 * 1024 * 1024,
        ),
    )(x_p, *flat_wb)

    # Slice away batch padding and the lane-padding of the class dim.
    return out_p[:batch, :num_class]


def init_params(key, word_dim, num_class):
    """Deterministic init matching nn.Linear's default uniform(-1/sqrt(in), 1/sqrt(in))."""
    dims = [word_dim, word_dim // 2, word_dim // 4, word_dim // 8, num_class]
    params = []
    for i in range(4):
        d_in, d_out = dims[i], dims[i + 1]
        key, kw, kb = jax.random.split(key, 3)
        bound = 1.0 / jnp.sqrt(float(d_in))
        # stored as (in, out) for x @ W
        w = jax.random.uniform(kw, (d_in, d_out), jnp.float32, -bound, bound)
        b = jax.random.uniform(kb, (1, d_out), jnp.float32, -bound, bound)
        params.append((w, b))
    return params


def reference_forward(x, params):
    h = x
    for i, (w, b) in enumerate(params):
        h = h @ w + b
        if i < 3:
            h = jnp.maximum(h, 0.0)
    return jax.nn.sigmoid(h)


if __name__ == "__main__":
    word_dim = 32
    num_class = 1
    batch = 64          # small, but exercises a multi-step grid with tm=16
    tm = 16

    key = jax.random.PRNGKey(0)
    key, kx = jax.random.split(key)
    x = jax.random.normal(kx, (batch, word_dim), jnp.float32)
    params = init_params(key, word_dim, num_class)

    out = mlp_forward(x, params, tm=tm)
    out = jax.block_until_ready(out)

    ref = reference_forward(x, params)
    assert out.shape == (batch, num_class), out.shape
    # approx-reciprocal sigmoid -> slightly relaxed tolerance
    assert jnp.allclose(out, ref, atol=1e-2, rtol=1e-2), (out, ref)

    print("KERNEL_OK")
</pallas_src>

<mosaic_0001>
module attributes {stable_mosaic.version = 11 : i64} {
  func.func @mlp_kernel(%arg0: i32, %arg1: memref<16x128xf32, #tpu.memory_space<vmem>>, %arg2: memref<128x128xf32, #tpu.memory_space<vmem>>, %arg3: memref<1x128xf32, #tpu.memory_space<vmem>>, %arg4: memref<128x128xf32, #tpu.memory_space<vmem>>, %arg5: memref<1x128xf32, #tpu.memory_space<vmem>>, %arg6: memref<128x128xf32, #tpu.memory_space<vmem>>, %arg7: memref<1x128xf32, #tpu.memory_space<vmem>>, %arg8: memref<128x128xf32, #tpu.memory_space<vmem>>, %arg9: memref<1x128xf32, #tpu.memory_space<vmem>>, %arg10: memref<16x128xf32, #tpu.memory_space<vmem>>) attributes {dimension_semantics = [#tpu.dimension_semantics<parallel>], iteration_bounds = array<i64: 4>, scalar_prefetch = 0 : i64, scratch_operands = 0 : i64, tpu.core_type = #tpu.core_type<tc>, window_params = [{transform_indices = @transform_0, window_bounds = array<i64: 16, 128>}, {pipeline_mode = #tpu.pipeline_mode<synchronous>, transform_indices = @transform_1, window_bounds = array<i64: 128, 128>}, {pipeline_mode = #tpu.pipeline_mode<synchronous>, transform_indices = @transform_2, window_bounds = array<i64: 1, 128>}, {pipeline_mode = #tpu.pipeline_mode<synchronous>, transform_indices = @transform_3, window_bounds = array<i64: 128, 128>}, {pipeline_mode = #tpu.pipeline_mode<synchronous>, transform_indices = @transform_4, window_bounds = array<i64: 1, 128>}, {pipeline_mode = #tpu.pipeline_mode<synchronous>, transform_indices = @transform_5, window_bounds = array<i64: 128, 128>}, {pipeline_mode = #tpu.pipeline_mode<synchronous>, transform_indices = @transform_6, window_bounds = array<i64: 1, 128>}, {pipeline_mode = #tpu.pipeline_mode<synchronous>, transform_indices = @transform_7, window_bounds = array<i64: 128, 128>}, {pipeline_mode = #tpu.pipeline_mode<synchronous>, transform_indices = @transform_8, window_bounds = array<i64: 1, 128>}, {transform_indices = @transform_9, window_bounds = array<i64: 16, 128>}]} {
    %c0 = arith.constant 0 : index
    %c0_0 = arith.constant 0 : index
    %0 = vector.load %arg1[%c0, %c0_0] : memref<16x128xf32, #tpu.memory_space<vmem>>, vector<16x128xf32>
    %c0_1 = arith.constant 0 : index
    %c0_2 = arith.constant 0 : index
    %1 = vector.load %arg3[%c0_1, %c0_2] : memref<1x128xf32, #tpu.memory_space<vmem>>, vector<1x128xf32>
    %c0_3 = arith.constant 0 : index
    %c0_4 = arith.constant 0 : index
    %2 = vector.load %arg5[%c0_3, %c0_4] : memref<1x128xf32, #tpu.memory_space<vmem>>, vector<1x128xf32>
    %c0_5 = arith.constant 0 : index
    %c0_6 = arith.constant 0 : index
    %3 = vector.load %arg7[%c0_5, %c0_6] : memref<1x128xf32, #tpu.memory_space<vmem>>, vector<1x128xf32>
    %c0_7 = arith.constant 0 : index
    %c0_8 = arith.constant 0 : index
    %4 = vector.load %arg9[%c0_7, %c0_8] : memref<1x128xf32, #tpu.memory_space<vmem>>, vector<1x128xf32>
    %c0_9 = arith.constant 0 : index
    %c0_10 = arith.constant 0 : index
    %5 = vector.load %arg2[%c0_9, %c0_10] : memref<128x128xf32, #tpu.memory_space<vmem>>, vector<128x128xf32>
    %cst = arith.constant dense<0.000000e+00> : vector<16x128xf32>
    %6 = tpu.matmul %0, %5, %cst {dimension_numbers = #tpu.dot_dimension_numbers<[1], [0], [0], [1], [0, 0, 1, 1], [], []>} : vector<16x128xf32>, vector<128x128xf32>, vector<16x128xf32> -> vector<16x128xf32>
    %7 = vector.broadcast %1 : vector<1x128xf32> to vector<16x128xf32>
    %8 = arith.addf %6, %7 : vector<16x128xf32>
    %cst_11 = arith.constant 0.000000e+00 : f32
    %9 = vector.broadcast %cst_11 : f32 to vector<16x128xf32>
    %10 = arith.maximumf %8, %9 : vector<16x128xf32>
    %c0_12 = arith.constant 0 : index
    %c0_13 = arith.constant 0 : index
    %11 = vector.load %arg4[%c0_12, %c0_13] : memref<128x128xf32, #tpu.memory_space<vmem>>, vector<128x128xf32>
    %cst_14 = arith.constant dense<0.000000e+00> : vector<16x128xf32>
    %12 = tpu.matmul %10, %11, %cst_14 {dimension_numbers = #tpu.dot_dimension_numbers<[1], [0], [0], [1], [0, 0, 1, 1], [], []>} : vector<16x128xf32>, vector<128x128xf32>, vector<16x128xf32> -> vector<16x128xf32>
    %13 = vector.broadcast %2 : vector<1x128xf32> to vector<16x128xf32>
    %14 = arith.addf %12, %13 : vector<16x128xf32>
    %cst_15 = arith.constant 0.000000e+00 : f32
    %15 = vector.broadcast %cst_15 : f32 to vector<16x128xf32>
    %16 = arith.maximumf %14, %15 : vector<16x128xf32>
    %c0_16 = arith.constant 0 : index
    %c0_17 = arith.constant 0 : index
    %17 = vector.load %arg6[%c0_16, %c0_17] : memref<128x128xf32, #tpu.memory_space<vmem>>, vector<128x128xf32>
    %cst_18 = arith.constant dense<0.000000e+00> : vector<16x128xf32>
    %18 = tpu.matmul %16, %17, %cst_18 {dimension_numbers = #tpu.dot_dimension_numbers<[1], [0], [0], [1], [0, 0, 1, 1], [], []>} : vector<16x128xf32>, vector<128x128xf32>, vector<16x128xf32> -> vector<16x128xf32>
    %19 = vector.broadcast %3 : vector<1x128xf32> to vector<16x128xf32>
    %20 = arith.addf %18, %19 : vector<16x128xf32>
    %cst_19 = arith.constant 0.000000e+00 : f32
    %21 = vector.broadcast %cst_19 : f32 to vector<16x128xf32>
    %22 = arith.maximumf %20, %21 : vector<16x128xf32>
    %c0_20 = arith.constant 0 : index
    %c0_21 = arith.constant 0 : index
    %23 = vector.load %arg8[%c0_20, %c0_21] : memref<128x128xf32, #tpu.memory_space<vmem>>, vector<128x128xf32>
    %cst_22 = arith.constant dense<0.000000e+00> : vector<16x128xf32>
    %24 = tpu.matmul %22, %23, %cst_22 {dimension_numbers = #tpu.dot_dimension_numbers<[1], [0], [0], [1], [0, 0, 1, 1], [], []>} : vector<16x128xf32>, vector<128x128xf32>, vector<16x128xf32> -> vector<16x128xf32>
    %25 = vector.broadcast %4 : vector<1x128xf32> to vector<16x128xf32>
    %26 = arith.addf %24, %25 : vector<16x128xf32>
    %cst_23 = arith.constant 0.000000e+00 : f32
    %27 = vector.broadcast %cst_23 : f32 to vector<16x128xf32>
    %28 = arith.subf %27, %26 : vector<16x128xf32>
    %29 = math.exp %28 : vector<16x128xf32>
    %cst_24 = arith.constant 1.000000e+00 : f32
    %30 = vector.broadcast %cst_24 : f32 to vector<16x128xf32>
    %31 = arith.addf %30, %29 : vector<16x128xf32>
    %32 = tpu.reciprocal %31 {approx = true} : vector<16x128xf32> -> vector<16x128xf32>
    %c0_25 = arith.constant 0 : index
    %c0_26 = arith.constant 0 : index
    %33 = vector.load %arg10[%c0_25, %c0_26] : memref<16x128xf32, #tpu.memory_space<vmem>>, vector<16x128xf32>
    tpu.vector_store %arg10[%c0_25, %c0_26], %32 {strides = array<i32>} : memref<16x128xf32, #tpu.memory_space<vmem>>, vector<16x128xf32>,
    return
  }
  func.func @transform_0(%arg0: i32) -> (i32, i32) {
    %c0_i32 = arith.constant 0 : i32
    %c0_i32_0 = arith.constant 0 : i32
    return %arg0, %c0_i32 : i32, i32
  }
  func.func @transform_1(%arg0: i32) -> (i32, i32) {
    %c0_i32 = arith.constant 0 : i32
    %c0_i32_0 = arith.constant 0 : i32
    %c0_i32_1 = arith.constant 0 : i32
    return %c0_i32, %c0_i32_0 : i32, i32
  }
  func.func @transform_2(%arg0: i32) -> (i32, i32) {
    %c0_i32 = arith.constant 0 : i32
    %c0_i32_0 = arith.constant 0 : i32
    %c0_i32_1 = arith.constant 0 : i32
    return %c0_i32, %c0_i32_0 : i32, i32
  }
  func.func @transform_3(%arg0: i32) -> (i32, i32) {
    %c0_i32 = arith.constant 0 : i32
    %c0_i32_0 = arith.constant 0 : i32
    %c0_i32_1 = arith.constant 0 : i32
    return %c0_i32, %c0_i32_0 : i32, i32
  }
  func.func @transform_4(%arg0: i32) -> (i32, i32) {
    %c0_i32 = arith.constant 0 : i32
    %c0_i32_0 = arith.constant 0 : i32
    %c0_i32_1 = arith.constant 0 : i32
    return %c0_i32, %c0_i32_0 : i32, i32
  }
  func.func @transform_5(%arg0: i32) -> (i32, i32) {
    %c0_i32 = arith.constant 0 : i32
    %c0_i32_0 = arith.constant 0 : i32
    %c0_i32_1 = arith.constant 0 : i32
    return %c0_i32, %c0_i32_0 : i32, i32
  }
  func.func @transform_6(%arg0: i32) -> (i32, i32) {
    %c0_i32 = arith.constant 0 : i32
    %c0_i32_0 = arith.constant 0 : i32
    %c0_i32_1 = arith.constant 0 : i32
    return %c0_i32, %c0_i32_0 : i32, i32
  }
  func.func @transform_7(%arg0: i32) -> (i32, i32) {
    %c0_i32 = arith.constant 0 : i32
    %c0_i32_0 = arith.constant 0 : i32
    %c0_i32_1 = arith.constant 0 : i32
    return %c0_i32, %c0_i32_0 : i32, i32
  }
  func.func @transform_8(%arg0: i32) -> (i32, i32) {
    %c0_i32 = arith.constant 0 : i32
    %c0_i32_0 = arith.constant 0 : i32
    %c0_i32_1 = arith.constant 0 : i32
    return %c0_i32, %c0_i32_0 : i32, i32
  }
  func.func @transform_9(%arg0: i32) -> (i32, i32) {
    %c0_i32 = arith.constant 0 : i32
    %c0_i32_0 = arith.constant 0 : i32
    return %arg0, %c0_i32 : i32, i32
  }
}

</mosaic_0001>

<llo_original>
// kernel: tpu_custom_call.1
$region0: #{tpu_custom_call.1}
  #allocation0 [shape = 'u32[]', space=smem, size = 0x4, offset = 0x4, fixed_abs, tag = 'smem constant byte address 0x4 - core index']
  #allocation1 [shape = 'u32[144,128]{1,0:T(1,128)}', space=vmem, size = 0x12000, scoped, tag = 'internal scratch']
  %s0 = inlined_call_operand.hbm [shape: f32[64,128], index: 0, kind: input, shape index: {}]
  %s1 = inlined_call_operand.hbm [shape: f32[128,128], index: 1, kind: input, shape index: {}]
  %s2 = inlined_call_operand.vmem [shape: f32[1,128], index: 2, kind: input, shape index: {}]
  %s3 = inlined_call_operand.hbm [shape: f32[128,128], index: 3, kind: input, shape index: {}]
  %s4 = inlined_call_operand.vmem [shape: f32[1,128], index: 4, kind: input, shape index: {}]
  %s5 = inlined_call_operand.hbm [shape: f32[128,128], index: 5, kind: input, shape index: {}]
  %s6 = inlined_call_operand.vmem [shape: f32[1,128], index: 6, kind: input, shape index: {}]
  %s7 = inlined_call_operand.hbm [shape: f32[128,128], index: 7, kind: input, shape index: {}]
  %s8 = inlined_call_operand.vmem [shape: f32[1,128], index: 8, kind: input, shape index: {}]
  %s9 = inlined_call_operand.hbm [shape: f32[64,128], index: 9, kind: output, shape index: {}]
  %s10 = sld [smem:[#allocation0]]
  $region89: #{tpu_custom_call.1} parent=0
    _
  %s12 = ssub.s32 1, %s10
  %s13 = scalar_select 0, %s12, %s10
  $region1: #{tpu_custom_call.1} parent=0
    #allocation2 [shape = 'u8[16384]{0}', space=vmem, size = 0x4000, scoped, tag = 'input window, operand 0']
    #allocation3 [shape = 's32[2]{0}', space=sflag, size = 0x8, scoped, tag = 'scoped memory for tpu_custom_call.1']
    #allocation4 [shape = 's32[2]{0}', space=sflag, size = 0x8, scoped, tag = 'scoped memory for tpu_custom_call.1']
    #allocation5 [shape = 'u8[65536]{0}', space=vmem, size = 0x10000, scoped, tag = 'input window, operand 1, single buffered']
    #allocation6 [shape = 's32[1]{0}', space=sflag, size = 0x4, scoped, tag = 'scoped memory for tpu_custom_call.1']
    #allocation7 [shape = 'u8[65536]{0}', space=vmem, size = 0x10000, scoped, tag = 'input window, operand 3, single buffered']
    #allocation8 [shape = 'u8[65536]{0}', space=vmem, size = 0x10000, scoped, tag = 'input window, operand 5, single buffered']
    #allocation9 [shape = 's32[1]{0}', space=sflag, size = 0x4, scoped, tag = 'scoped memory for tpu_custom_call.1']
    #allocation10 [shape = 'u8[65536]{0}', space=vmem, size = 0x10000, scoped, tag = 'input window, operand 7, single buffered']
    #allocation11 [shape = 'u8[16384]{0}', space=vmem, size = 0x4000, scoped, tag = 'output window, operand 0']
    %14 = vsyncpa [#allocation3], 0
    %s15 = scalar_lea.sflag [#allocation3], 1
    %16 = vsyncpa %s15, 0
    %17 = vsyncpa [#allocation6], 0
    %18 = vsyncpa [#allocation9], 0
    %19 = vsyncpa [#allocation4], 0
    %s20 = scalar_lea.sflag [#allocation4], 1
    %21 = vsyncpa %s20, 0
    loop: start=0, step=1, limit=6
    $region2: #{tpu_custom_call.1} parent=1 // loop_pre_header
      _
    $region3: #{tpu_custom_call.1} parent=1 // loop_header
      %s23 = sphi 0, %s27
      %p24 = scmp.ge.s32.totalorder %s23, 6
      %s33 = sphi 0, %s35
      %s36 = sphi 0, %s33
      %s37 = sphi 0, %s36
      %s53 = sphi 0, %s37
      %s57 = sphi 0, %s57
      %s59 = sphi 0, %s57
      %s60 = sphi 0, %s59
      %s74 = sphi 0, %s60
      %s78 = sphi 0, %s78
      %s80 = sphi 0, %s78
      %s81 = sphi 0, %s80
      %s95 = sphi 0, %s81
      %s99 = sphi 0, %s99
      %s101 = sphi 0, %s99
      %s102 = sphi 0, %s101
      %s116 = sphi 0, %s102
      %s120 = sphi 0, %s120
      %s122 = sphi 0, %s120
      %s123 = sphi 0, %s122
      %s137 = sphi 0, %s123
      %s141 = sphi 0, %s141
      %s143 = sphi 0, %s141
      %s144 = sphi 0, %s143
      %s158 = sphi 0, %s144
      %s162 = sphi 0, %s162
      %s164 = sphi 0, %s162
      %s165 = sphi 0, %s164
      %s179 = sphi 0, %s165
      %s183 = sphi 0, %s183
      %s185 = sphi 0, %s183
      %s186 = sphi 0, %s185
      %s200 = sphi 0, %s186
      %s204 = sphi 0, %s204
      %s206 = sphi 0, %s204
      %s207 = sphi 0, %s206
      %s221 = sphi 0, %s207
      %s227 = sphi 0, %s229
      %s230 = sphi 0, %s227
      %s231 = sphi 0, %s230
      %s247 = sphi 0, %s231
    $region4: #{tpu_custom_call.1} parent=1 // loop_header_branch
      %26 = sbr.rel (%p24) target = $region8
    $region5: #{tpu_custom_call.1} parent=1 // loop_body
      %s28 = ssub.s32 %s23, 1
      %s29 = ssub.s32 %s23, 2
      %s30 = sadd.s32 %s23, 1
      %s31 = ssub.s32 %s23, %s30
      %p32 = scmp.eq.s32.totalorder %s31, 0
      %s34 = sadd.s32 %s33, 1
      %s35 = scalar_select %p32, %s33, %s34
      %p38 = pneg %p32
      %p39 = scmp.eq.s32.totalorder %s23, 3
      %p40 = por %p38, %p39
      %p41 = scmp.ne.s32.totalorder %s33, %s36
      %p42 = scmp.eq.s32.totalorder %s23, 0
      %p43 = por %p41, %p42
      %p44 = scmp.ne.s32.totalorder %s33, %s36
      %p45 = scmp.eq.s32.totalorder %s28, 3
      %p46 = por %p44, %p45
      %p47 = scmp.ne.s32.totalorder %s36, %s37
      %p48 = scmp.eq.s32.totalorder %s28, 0
      %p49 = por %p47, %p48
      %p50 = scmp.ne.s32.totalorder %s36, %s37
      %p51 = scmp.eq.s32.totalorder %s29, 3
      %p52 = por %p50, %p51
      %p54 = scmp.ne.s32.totalorder %s37, %s53
      %p55 = scmp.eq.s32.totalorder %s29, 0
      %p56 = por %p54, %p55
      %s58 = sadd.s32 %s57, 1
      %p61 = scmp.eq.s32.totalorder %s23, 3
      %p62 = scmp.ne.s32.totalorder %s57, %s59
      %p63 = scmp.eq.s32.totalorder %s23, 0
      %p64 = por %p62, %p63
      %p65 = scmp.ne.s32.totalorder %s57, %s59
      %p66 = scmp.eq.s32.totalorder %s28, 3
      %p67 = por %p65, %p66
      %p68 = scmp.ne.s32.totalorder %s59, %s60
      %p69 = scmp.eq.s32.totalorder %s28, 0
      %p70 = por %p68, %p69
      %p71 = scmp.ne.s32.totalorder %s59, %s60
      %p72 = scmp.eq.s32.totalorder %s29, 3
      %p73 = por %p71, %p72
      %p75 = scmp.ne.s32.totalorder %s60, %s74
      %p76 = scmp.eq.s32.totalorder %s29, 0
      %p77 = por %p75, %p76
      %s79 = sadd.s32 %s78, 1
      %p82 = scmp.eq.s32.totalorder %s23, 3
      %p83 = scmp.ne.s32.totalorder %s78, %s80
      %p84 = scmp.eq.s32.totalorder %s23, 0
      %p85 = por %p83, %p84
      %p86 = scmp.ne.s32.totalorder %s78, %s80
      %p87 = scmp.eq.s32.totalorder %s28, 3
      %p88 = por %p86, %p87
      %p89 = scmp.ne.s32.totalorder %s80, %s81
      %p90 = scmp.eq.s32.totalorder %s28, 0
      %p91 = por %p89, %p90
      %p92 = scmp.ne.s32.totalorder %s80, %s81
      %p93 = scmp.eq.s32.totalorder %s29, 3
      %p94 = por %p92, %p93
      %p96 = scmp.ne.s32.totalorder %s81, %s95
      %p97 = scmp.eq.s32.totalorder %s29, 0
      %p98 = por %p96, %p97
      %s100 = sadd.s32 %s99, 1
      %p103 = scmp.eq.s32.totalorder %s23, 3
      %p104 = scmp.ne.s32.totalorder %s99, %s101
      %p105 = scmp.eq.s32.totalorder %s23, 0
      %p106 = por %p104, %p105
      %p107 = scmp.ne.s32.totalorder %s99, %s101
      %p108 = scmp.eq.s32.totalorder %s28, 3
      %p109 = por %p107, %p108
      %p110 = scmp.ne.s32.totalorder %s101, %s102
      %p111 = scmp.eq.s32.totalorder %s28, 0
      %p112 = por %p110, %p111
      %p113 = scmp.ne.s32.totalorder %s101, %s102
      %p114 = scmp.eq.s32.totalorder %s29, 3
      %p115 = por %p113, %p114
      %p117 = scmp.ne.s32.totalorder %s102, %s116
      %p118 = scmp.eq.s32.totalorder %s29, 0
      %p119 = por %p117, %p118
      %s121 = sadd.s32 %s120, 1
      %p124 = scmp.eq.s32.totalorder %s23, 3
      %p125 = scmp.ne.s32.totalorder %s120, %s122
      %p126 = scmp.eq.s32.totalorder %s23, 0
      %p127 = por %p125, %p126
      %p128 = scmp.ne.s32.totalorder %s120, %s122
      %p129 = scmp.eq.s32.totalorder %s28, 3
      %p130 = por %p128, %p129
      %p131 = scmp.ne.s32.totalorder %s122, %s123
      %p132 = scmp.eq.s32.totalorder %s28, 0
      %p133 = por %p131, %p132
      %p134 = scmp.ne.s32.totalorder %s122, %s123
      %p135 = scmp.eq.s32.totalorder %s29, 3
      %p136 = por %p134, %p135
      %p138 = scmp.ne.s32.totalorder %s123, %s137
      %p139 = scmp.eq.s32.totalorder %s29, 0
      %p140 = por %p138, %p139
      %s142 = sadd.s32 %s141, 1
      %p145 = scmp.eq.s32.totalorder %s23, 3
      %p146 = scmp.ne.s32.totalorder %s141, %s143
      %p147 = scmp.eq.s32.totalorder %s23, 0
      %p148 = por %p146, %p147
      %p149 = scmp.ne.s32.totalorder %s141, %s143
      %p150 = scmp.eq.s32.totalorder %s28, 3
      %p151 = por %p149, %p150
      %p152 = scmp.ne.s32.totalorder %s143, %s144
      %p153 = scmp.eq.s32.totalorder %s28, 0
      %p154 = por %p152, %p153
      %p155 = scmp.ne.s32.totalorder %s143, %s144
      %p156 = scmp.eq.s32.totalorder %s29, 3
      %p157 = por %p155, %p156
      %p159 = scmp.ne.s32.totalorder %s144, %s158
      %p160 = scmp.eq.s32.totalorder %s29, 0
      %p161 = por %p159, %p160
      %s163 = sadd.s32 %s162, 1
      %p166 = scmp.eq.s32.totalorder %s23, 3
      %p167 = scmp.ne.s32.totalorder %s162, %s164
      %p168 = scmp.eq.s32.totalorder %s23, 0
      %p169 = por %p167, %p168
      %p170 = scmp.ne.s32.totalorder %s162, %s164
      %p171 = scmp.eq.s32.totalorder %s28, 3
      %p172 = por %p170, %p171
      %p173 = scmp.ne.s32.totalorder %s164, %s165
      %p174 = scmp.eq.s32.totalorder %s28, 0
      %p175 = por %p173, %p174
      %p176 = scmp.ne.s32.totalorder %s164, %s165
      %p177 = scmp.eq.s32.totalorder %s29, 3
      %p178 = por %p176, %p177
      %p180 = scmp.ne.s32.totalorder %s165, %s179
      %p181 = scmp.eq.s32.totalorder %s29, 0
      %p182 = por %p180, %p181
      %s184 = sadd.s32 %s183, 1
      %p187 = scmp.eq.s32.totalorder %s23, 3
      %p188 = scmp.ne.s32.totalorder %s183, %s185
      %p189 = scmp.eq.s32.totalorder %s23, 0
      %p190 = por %p188, %p189
      %p191 = scmp.ne.s32.totalorder %s183, %s185
      %p192 = scmp.eq.s32.totalorder %s28, 3
      %p193 = por %p191, %p192
      %p194 = scmp.ne.s32.totalorder %s185, %s186
      %p195 = scmp.eq.s32.totalorder %s28, 0
      %p196 = por %p194, %p195
      %p197 = scmp.ne.s32.totalorder %s185, %s186
      %p198 = scmp.eq.s32.totalorder %s29, 3
      %p199 = por %p197, %p198
      %p201 = scmp.ne.s32.totalorder %s186, %s200
      %p202 = scmp.eq.s32.totalorder %s29, 0
      %p203 = por %p201, %p202
      %s205 = sadd.s32 %s204, 1
      %p208 = scmp.eq.s32.totalorder %s23, 3
      %p209 = scmp.ne.s32.totalorder %s204, %s206
      %p210 = scmp.eq.s32.totalorder %s23, 0
      %p211 = por %p209, %p210
      %p212 = scmp.ne.s32.totalorder %s204, %s206
      %p213 = scmp.eq.s32.totalorder %s28, 3
      %p214 = por %p212, %p213
      %p215 = scmp.ne.s32.totalorder %s206, %s207
      %p216 = scmp.eq.s32.totalorder %s28, 0
      %p217 = por %p215, %p216
      %p218 = scmp.ne.s32.totalorder %s206, %s207
      %p219 = scmp.eq.s32.totalorder %s29, 3
      %p220 = por %p218, %p219
      %p222 = scmp.ne.s32.totalorder %s207, %s221
      %p223 = scmp.eq.s32.totalorder %s29, 0
      %p224 = por %p222, %p223
      %s225 = ssub.s32 %s23, %s30
      %p226 = scmp.eq.s32.totalorder %s225, 0
      %s228 = sadd.s32 %s227, 1
      %s229 = scalar_select %p226, %s227, %s228
      %p232 = pneg %p226
      %p233 = scmp.eq.s32.totalorder %s23, 3
      %p234 = por %p232, %p233
      %p235 = scmp.ne.s32.totalorder %s227, %s230
      %p236 = scmp.eq.s32.totalorder %s23, 0
      %p237 = por %p235, %p236
      %p238 = scmp.ne.s32.totalorder %s227, %s230
      %p239 = scmp.eq.s32.totalorder %s28, 3
      %p240 = por %p238, %p239
      %p241 = scmp.ne.s32.totalorder %s230, %s231
      %p242 = scmp.eq.s32.totalorder %s28, 0
      %p243 = por %p241, %p242
      %p244 = scmp.ne.s32.totalorder %s230, %s231
      %p245 = scmp.eq.s32.totalorder %s29, 3
      %p246 = por %p244, %p245
      %p248 = scmp.ne.s32.totalorder %s231, %s247
      %p249 = scmp.eq.s32.totalorder %s29, 0
      %p250 = por %p248, %p249
      %p251 = scmp.le.s32.totalorder 1, %s23
      %p252 = scmp.lt.s32.totalorder %s23, 5
      %p253 = pnand %p251, %p252
      %p254 = pneg %p253
      // Predicated region
      $region9: #{tpu_custom_call.1} parent=5 // pred_check
        _
      $region10: #{tpu_custom_call.1} parent=5 // pred_check_branch
        %256 = sbr.rel (%p253) target = $region12
      $region11: #{tpu_custom_call.1} parent=5 // pred_region
        %s257 = ssub.s32 %s23, 1
        // Predicated region
        $region13: #{tpu_custom_call.1} parent=11 // pred_check
          %p258 = pneg %p70
        $region14: #{tpu_custom_call.1} parent=11 // pred_check_branch
          %260 = sbr.rel (%p258) target = $region16
        $region15: #{tpu_custom_call.1} parent=11 // pred_region
          %s262 = ssub.s32 2048, 2048
          %263 = vsyncadd [#allocation6], %s262
          %s264 = sshll.u32 [#allocation5], 4
          %s265 = int_to_ptr.vmem [resolvable:$true] %s264
          %270 = dma.hbm_to_vmem [thread:$0]  %s1, 2048, %s265, [#allocation6], 128, 128, 8
        $region16: #{tpu_custom_call.1} parent=11 // pred_fallthru
          _
        // Predicated region
        $region17: #{tpu_custom_call.1} parent=11 // pred_check
          %p271 = pneg %p91
        $region18: #{tpu_custom_call.1} parent=11 // pred_check_branch
          %273 = sbr.rel (%p271) target = $region20
        $region19: #{tpu_custom_call.1} parent=11 // pred_region
          _
        $region20: #{tpu_custom_call.1} parent=11 // pred_fallthru
          _
        // Predicated region
        $region21: #{tpu_custom_call.1} parent=11 // pred_check
          %p274 = pneg %p112
        $region22: #{tpu_custom_call.1} parent=11 // pred_check_branch
          %276 = sbr.rel (%p274) target = $region24
        $region23: #{tpu_custom_call.1} parent=11 // pred_region
          %s278 = ssub.s32 2048, 2048
          %279 = vsyncadd [#allocation6], %s278
          %s280 = sshll.u32 [#allocation7], 4
          %s281 = int_to_ptr.vmem [resolvable:$true] %s280
          %286 = dma.hbm_to_vmem [thread:$0]  %s3, 2048, %s281, [#allocation6], 128, 128, 8
        $region24: #{tpu_custom_call.1} parent=11 // pred_fallthru
          _
        // Predicated region
        $region25: #{tpu_custom_call.1} parent=11 // pred_check
          %p287 = pneg %p133
        $region26: #{tpu_custom_call.1} parent=11 // pred_check_branch
          %289 = sbr.rel (%p287) target = $region28
        $region27: #{tpu_custom_call.1} parent=11 // pred_region
          _
        $region28: #{tpu_custom_call.1} parent=11 // pred_fallthru
          _
        // Predicated region
        $region29: #{tpu_custom_call.1} parent=11 // pred_check
          %p290 = pneg %p154
        $region30: #{tpu_custom_call.1} parent=11 // pred_check_branch
          %292 = sbr.rel (%p290) target = $region32
        $region31: #{tpu_custom_call.1} parent=11 // pred_region
          %s294 = ssub.s32 2048, 2048
          %295 = vsyncadd [#allocation9], %s294
          %s296 = sshll.u32 [#allocation8], 4
          %s297 = int_to_ptr.vmem [resolvable:$true] %s296
          %302 = dma.hbm_to_vmem [thread:$0]  %s5, 2048, %s297, [#allocation9], 128, 128, 8
        $region32: #{tpu_custom_call.1} parent=11 // pred_fallthru
          _
        // Predicated region
        $region33: #{tpu_custom_call.1} parent=11 // pred_check
          %p303 = pneg %p175
        $region34: #{tpu_custom_call.1} parent=11 // pred_check_branch
          %305 = sbr.rel (%p303) target = $region36
        $region35: #{tpu_custom_call.1} parent=11 // pred_region
          _
        $region36: #{tpu_custom_call.1} parent=11 // pred_fallthru
          _
        // Predicated region
        $region37: #{tpu_custom_call.1} parent=11 // pred_check
          %p306 = pneg %p196
        $region38: #{tpu_custom_call.1} parent=11 // pred_check_branch
          %308 = sbr.rel (%p306) target = $region40
        $region39: #{tpu_custom_call.1} parent=11 // pred_region
          %s310 = ssub.s32 2048, 2048
          %311 = vsyncadd [#allocation9], %s310
          %s312 = sshll.u32 [#allocation10], 4
          %s313 = int_to_ptr.vmem [resolvable:$true] %s312
          %318 = dma.hbm_to_vmem [thread:$0]  %s7, 2048, %s313, [#allocation9], 128, 128, 8
        $region40: #{tpu_custom_call.1} parent=11 // pred_fallthru
          _
        // Predicated region
        $region41: #{tpu_custom_call.1} parent=11 // pred_check
          %p319 = pneg %p217
        $region42: #{tpu_custom_call.1} parent=11 // pred_check_branch
          %321 = sbr.rel (%p319) target = $region44
        $region43: #{tpu_custom_call.1} parent=11 // pred_region
          _
        $region44: #{tpu_custom_call.1} parent=11 // pred_fallthru
          _
      $region12: #{tpu_custom_call.1} parent=5 // pred_fallthru
        _
      %p322 = scmp.lt.s32.totalorder %s23, 4
      // Predicated region
      $region45: #{tpu_custom_call.1} parent=5 // pred_check
        %p323 = pneg %p322
      $region46: #{tpu_custom_call.1} parent=5 // pred_check_branch
        %325 = sbr.rel (%p323) target = $region48
      $region47: #{tpu_custom_call.1} parent=5 // pred_region
        // Predicated region
        $region49: #{tpu_custom_call.1} parent=47 // pred_check
          %p326 = pneg %p43
        $region50: #{tpu_custom_call.1} parent=47 // pred_check_branch
          %328 = sbr.rel (%p326) target = $region52
        $region51: #{tpu_custom_call.1} parent=47 // pred_region
          %s329 = sand.u32 %s33, 1
          %s330 = scalar_lea.sflag [#allocation3], %s329
          %s331 = sand.u32 %s33, 1
          %s332 = smul.addr %s331, 16
          %s333 = scalar_lea.vmem [#allocation2], %s332
          %s334 = smul.u32 2, %s23
          %s336 = ssub.s32 256, 256
          %337 = vsyncadd %s330, %s336
          %s338 = smul.addr %s334, 128
          %s339 = scalar_lea.hbm %s0, %s338
          %s340 = sshll.u32 %s333, 4
          %s341 = int_to_ptr.vmem [resolvable:$true] %s340
          %346 = dma.hbm_to_vmem [thread:$0]  %s339, 256, %s341, %s330, 128, 128, 8
        $region52: #{tpu_custom_call.1} parent=47 // pred_fallthru
          _
      $region48: #{tpu_custom_call.1} parent=5 // pred_fallthru
        _
      %p347 = scmp.le.s32.totalorder 1, %s23
      %p348 = scmp.lt.s32.totalorder %s23, 5
      %p349 = pnand %p347, %p348
      %p350 = pneg %p349
      // Predicated region
      $region53: #{tpu_custom_call.1} parent=5 // pred_check
        _
      $region54: #{tpu_custom_call.1} parent=5 // pred_check_branch
        %352 = sbr.rel (%p349) target = $region56
      $region55: #{tpu_custom_call.1} parent=5 // pred_region
        %s353 = ssub.s32 %s23, 1
        %s354 = sand.u32 %s36, 1
        %s355 = scalar_lea.sflag [#allocation3], %s354
        %s356 = sand.u32 %s36, 1
        %s357 = smul.addr %s356, 16
        %s358 = scalar_lea.vmem [#allocation2], %s357
        // Predicated region
        $region57: #{tpu_custom_call.1} parent=55 // pred_check
          %p359 = pneg %p49
        $region58: #{tpu_custom_call.1} parent=55 // pred_check_branch
          %361 = sbr.rel (%p359) target = $region60
        $region59: #{tpu_custom_call.1} parent=55 // pred_region
          %362 = dma.done %s355, 256
        $region60: #{tpu_custom_call.1} parent=55 // pred_fallthru
          _
        // Predicated region
        $region61: #{tpu_custom_call.1} parent=55 // pred_check
          %p363 = pneg %p70
        $region62: #{tpu_custom_call.1} parent=55 // pred_check_branch
          %365 = sbr.rel (%p363) target = $region64
        $region63: #{tpu_custom_call.1} parent=55 // pred_region
          %366 = dma.done [#allocation6], 2048
        $region64: #{tpu_custom_call.1} parent=55 // pred_fallthru
          _
        // Predicated region
        $region65: #{tpu_custom_call.1} parent=55 // pred_check
          %p367 = pneg %p112
        $region66: #{tpu_custom_call.1} parent=55 // pred_check_branch
          %369 = sbr.rel (%p367) target = $region68
        $region67: #{tpu_custom_call.1} parent=55 // pred_region
          %370 = dma.done [#allocation6], 2048
        $region68: #{tpu_custom_call.1} parent=55 // pred_fallthru
          _
        // Predicated region
        $region69: #{tpu_custom_call.1} parent=55 // pred_check
          %p371 = pneg %p154
        $region70: #{tpu_custom_call.1} parent=55 // pred_check_branch
          %373 = sbr.rel (%p371) target = $region72
        $region71: #{tpu_custom_call.1} parent=55 // pred_region
          %374 = dma.done [#allocation9], 2048
        $region72: #{tpu_custom_call.1} parent=55 // pred_fallthru
          _
        // Predicated region
        $region73: #{tpu_custom_call.1} parent=55 // pred_check
          %p375 = pneg %p196
        $region74: #{tpu_custom_call.1} parent=55 // pred_check_branch
          %377 = sbr.rel (%p375) target = $region76
        $region75: #{tpu_custom_call.1} parent=55 // pred_region
          %378 = dma.done [#allocation9], 2048
        $region76: #{tpu_custom_call.1} parent=55 // pred_fallthru
          _
        %s379 = sand.u32 %s36, 1
        %s380 = scalar_lea.sflag [#allocation3], %s379
        %s381 = sand.u32 %s36, 1
        %s382 = smul.addr %s381, 16
        %s383 = scalar_lea.vmem [#allocation2], %s382
        %p384 = pneg %p49
        %p385 = pneg %p46
        %p386 = pneg %p70
        %p387 = pneg %p67
        %p388 = pneg %p91
        %p389 = pneg %p88
        %p390 = pneg %p112
        %p391 = pneg %p109
        %p392 = pneg %p133
        %p393 = pneg %p130
        %p394 = pneg %p154
        %p395 = pneg %p151
        %p396 = pneg %p175
        %p397 = pneg %p172
        %p398 = pneg %p196
        %p399 = pneg %p193
        %p400 = pneg %p217
        %p401 = pneg %p214
        %p402 = pneg %p243
        %p403 = pneg %p240
        %s404 = sand.u32 %s230, 1
        %s405 = scalar_lea.sflag [#allocation4], %s404
        %s406 = sand.u32 %s230, 1
        %s407 = smul.addr %s406, 16
        %s408 = scalar_lea.vmem [#allocation11], %s407
        %s409 = smul.u32 2, %s28
        %s410 = smul.u32 2, %s28
        %v411 = vld [vmem:[%s358] sm:$0xff]
        %v412 = vld [vmem:[%s358 + $0x8] sm:$0xff]
        %v413 = vld [vmem:[%s2] sm:$0x1]
        %v414 = vld [vmem:[%s4] sm:$0x1]
        %v415 = vld [vmem:[%s6] sm:$0x1]
        %v416 = vld [vmem:[%s8] sm:$0x1]
        %v417 = vld [vmem:[#allocation5] sm:$0xff]
        %v418 = vld [vmem:[#allocation5 + $0x8] sm:$0xff]
        %v419 = vld [vmem:[#allocation5 + $0x10] sm:$0xff]
        %v420 = vld [vmem:[#allocation5 + $0x18] sm:$0xff]
        %v421 = vld [vmem:[#allocation5 + $0x20] sm:$0xff]
        %v422 = vld [vmem:[#allocation5 + $0x28] sm:$0xff]
        %v423 = vld [vmem:[#allocation5 + $0x30] sm:$0xff]
        %v424 = vld [vmem:[#allocation5 + $0x38] sm:$0xff]
        %v425 = vld [vmem:[#allocation5 + $0x40] sm:$0xff]
        %v426 = vld [vmem:[#allocation5 + $0x48] sm:$0xff]
        %v427 = vld [vmem:[#allocation5 + $0x50] sm:$0xff]
        %v428 = vld [vmem:[#allocation5 + $0x58] sm:$0xff]
        %v429 = vld [vmem:[#allocation5 + $0x60] sm:$0xff]
        %v430 = vld [vmem:[#allocation5 + $0x68] sm:$0xff]
        %v431 = vld [vmem:[#allocation5 + $0x70] sm:$0xff]
        %v432 = vld [vmem:[#allocation5 + $0x78] sm:$0xff]
        %v434 = vlaneseq
        %v435 = vshrl.u32 %v434, 7
        %v436 = vsub.s32 0, %v435
        %v437 = vrot.slane %v413, %v436
        %439 = vmatprep.subr.mxu0 0.0
        %440 = vmatpush1.msra.mxu0 %v417
        %441 = vmatprep.subr.mxu0 0.0
        %442 = vmatpush1.msra.mxu0 %v418
        %443 = vmatprep.subr.mxu0 0.0
        %444 = vmatpush1.msra.mxu0 %v419
        %445 = vmatprep.subr.mxu0 0.0
        %446 = vmatpush1.msra.mxu0 %v420
        %447 = vmatprep.subr.mxu0 0.0
        %448 = vmatpush1.msra.mxu0 %v421
        %449 = vmatprep.subr.mxu0 0.0
        %450 = vmatpush1.msra.mxu0 %v422
        %451 = vmatprep.subr.mxu0 0.0
        %452 = vmatpush1.msra.mxu0 %v423
        %453 = vmatprep.subr.mxu0 0.0
        %454 = vmatpush1.msra.mxu0 %v424
        %455 = vmatprep.subr.mxu0 0.0
        %456 = vmatpush1.msra.mxu0 %v425
        %457 = vmatprep.subr.mxu0 0.0
        %458 = vmatpush1.msra.mxu0 %v426
        %459 = vmatprep.subr.mxu0 0.0
        %460 = vmatpush1.msra.mxu0 %v427
        %461 = vmatprep.subr.mxu0 0.0
        %462 = vmatpush1.msra.mxu0 %v428
        %463 = vmatprep.subr.mxu0 0.0
        %464 = vmatpush1.msra.mxu0 %v429
        %465 = vmatprep.subr.mxu0 0.0
        %466 = vmatpush1.msra.mxu0 %v430
        %467 = vmatprep.subr.mxu0 0.0
        %468 = vmatpush1.msra.mxu0 %v431
        %469 = vmatprep.subr.mxu0 0.0
        %470 = vmatpush1.msra.mxu0 %v432
        %471 = vmatprep.subr.mxu0 0.0
        %472 = vmatpush1.msra.mxu0 0.0
        %473 = vmatprep.subr.mxu0 0.0
        %474 = vmatpush1.msra.mxu0 0.0
        %475 = vmatprep.subr.mxu0 0.0
        %476 = vmatpush1.msra.mxu0 0.0
        %477 = vmatprep.subr.mxu0 0.0
        %478 = vmatpush1.msra.mxu0 0.0
        %479 = vmatprep.subr.mxu0 0.0
        %480 = vmatpush1.msra.mxu0 0.0
        %481 = vmatprep.subr.mxu0 0.0
        %482 = vmatpush1.msra.mxu0 0.0
        %483 = vmatprep.subr.mxu0 0.0
        %484 = vmatpush1.msra.mxu0 0.0
        %485 = vmatprep.subr.mxu0 0.0
        %486 = vmatpush1.msra.mxu0 0.0
        %487 = vmatprep.subr.mxu0 0.0
        %488 = vmatpush1.msra.mxu0 0.0
        %489 = vmatprep.subr.mxu0 0.0
        %490 = vmatpush1.msra.mxu0 0.0
        %491 = vmatprep.subr.mxu0 0.0
        %492 = vmatpush1.msra.mxu0 0.0
        %493 = vmatprep.subr.mxu0 0.0
        %494 = vmatpush1.msra.mxu0 0.0
        %495 = vmatprep.subr.mxu0 0.0
        %496 = vmatpush1.msra.mxu0 0.0
        %497 = vmatprep.subr.mxu0 0.0
        %498 = vmatpush1.msra.mxu0 0.0
        %499 = vmatprep.subr.mxu0 0.0
        %500 = vmatpush1.msra.mxu0 0.0
        %501 = vmatprep.subr.mxu0 0.0
        %502 = vmatpush1.msra.mxu0 0.0
        %503 = vmatprep.mubr.f32.mxu0 0.0
        %504 = vmatmul.mubr.f32.gmra.mrb[0].mxu0 %v411
        %v505 = vpop.f32.mrb[0].mxu0
        %v506 = vadd.f32 %v437, %v505
        %v507 = vpop.f32.mrb[0].mxu0
        %508 = vmatprep.mubr.f32.mxu0 0.0
        %509 = vmatmul.mubr.f32.gmra.mrb[0].mxu0 %v412
        %v510 = vpop.f32.mrb[0].mxu0
        %v511 = vadd.f32 %v437, %v510
        %v512 = vpop.f32.mrb[0].mxu0
        %513 = vdwg.mxu0
        %v514 = vmax.f32 %v506, 0.0
        %v515 = vmax.f32 %v511, 0.0
        %v516 = vld [vmem:[#allocation7] sm:$0xff]
        %v517 = vld [vmem:[#allocation7 + $0x8] sm:$0xff]
        %v518 = vld [vmem:[#allocation7 + $0x10] sm:$0xff]
        %v519 = vld [vmem:[#allocation7 + $0x18] sm:$0xff]
        %v520 = vld [vmem:[#allocation7 + $0x20] sm:$0xff]
        %v521 = vld [vmem:[#allocation7 + $0x28] sm:$0xff]
        %v522 = vld [vmem:[#allocation7 + $0x30] sm:$0xff]
        %v523 = vld [vmem:[#allocation7 + $0x38] sm:$0xff]
        %v524 = vld [vmem:[#allocation7 + $0x40] sm:$0xff]
        %v525 = vld [vmem:[#allocation7 + $0x48] sm:$0xff]
        %v526 = vld [vmem:[#allocation7 + $0x50] sm:$0xff]
        %v527 = vld [vmem:[#allocation7 + $0x58] sm:$0xff]
        %v528 = vld [vmem:[#allocation7 + $0x60] sm:$0xff]
        %v529 = vld [vmem:[#allocation7 + $0x68] sm:$0xff]
        %v530 = vld [vmem:[#allocation7 + $0x70] sm:$0xff]
        %v531 = vld [vmem:[#allocation7 + $0x78] sm:$0xff]
        %v533 = vlaneseq
        %v534 = vshrl.u32 %v533, 7
        %v535 = vsub.s32 0, %v534
        %v536 = vrot.slane %v414, %v535
        %538 = vmatprep.subr.mxu0 0.0
        %539 = vmatpush1.msra.mxu0 %v516
        %540 = vmatprep.subr.mxu0 0.0
        %541 = vmatpush1.msra.mxu0 %v517
        %542 = vmatprep.subr.mxu0 0.0
        %543 = vmatpush1.msra.mxu0 %v518
        %544 = vmatprep.subr.mxu0 0.0
        %545 = vmatpush1.msra.mxu0 %v519
        %546 = vmatprep.subr.mxu0 0.0
        %547 = vmatpush1.msra.mxu0 %v520
        %548 = vmatprep.subr.mxu0 0.0
        %549 = vmatpush1.msra.mxu0 %v521
        %550 = vmatprep.subr.mxu0 0.0
        %551 = vmatpush1.msra.mxu0 %v522
        %552 = vmatprep.subr.mxu0 0.0
        %553 = vmatpush1.msra.mxu0 %v523
        %554 = vmatprep.subr.mxu0 0.0
        %555 = vmatpush1.msra.mxu0 %v524
        %556 = vmatprep.subr.mxu0 0.0
        %557 = vmatpush1.msra.mxu0 %v525
        %558 = vmatprep.subr.mxu0 0.0
        %559 = vmatpush1.msra.mxu0 %v526
        %560 = vmatprep.subr.mxu0 0.0
        %561 = vmatpush1.msra.mxu0 %v527
        %562 = vmatprep.subr.mxu0 0.0
        %563 = vmatpush1.msra.mxu0 %v528
        %564 = vmatprep.subr.mxu0 0.0
        %565 = vmatpush1.msra.mxu0 %v529
        %566 = vmatprep.subr.mxu0 0.0
        %567 = vmatpush1.msra.mxu0 %v530
        %568 = vmatprep.subr.mxu0 0.0
        %569 = vmatpush1.msra.mxu0 %v531
        %570 = vmatprep.subr.mxu0 0.0
        %571 = vmatpush1.msra.mxu0 0.0
        %572 = vmatprep.subr.mxu0 0.0
        %573 = vmatpush1.msra.mxu0 0.0
        %574 = vmatprep.subr.mxu0 0.0
        %575 = vmatpush1.msra.mxu0 0.0
        %576 = vmatprep.subr.mxu0 0.0
        %577 = vmatpush1.msra.mxu0 0.0
        %578 = vmatprep.subr.mxu0 0.0
        %579 = vmatpush1.msra.mxu0 0.0
        %580 = vmatprep.subr.mxu0 0.0
        %581 = vmatpush1.msra.mxu0 0.0
        %582 = vmatprep.subr.mxu0 0.0
        %583 = vmatpush1.msra.mxu0 0.0
        %584 = vmatprep.subr.mxu0 0.0
        %585 = vmatpush1.msra.mxu0 0.0
        %586 = vmatprep.subr.mxu0 0.0
        %587 = vmatpush1.msra.mxu0 0.0
        %588 = vmatprep.subr.mxu0 0.0
        %589 = vmatpush1.msra.mxu0 0.0
        %590 = vmatprep.subr.mxu0 0.0
        %591 = vmatpush1.msra.mxu0 0.0
        %592 = vmatprep.subr.mxu0 0.0
        %593 = vmatpush1.msra.mxu0 0.0
        %594 = vmatprep.subr.mxu0 0.0
        %595 = vmatpush1.msra.mxu0 0.0
        %596 = vmatprep.subr.mxu0 0.0
        %597 = vmatpush1.msra.mxu0 0.0
        %598 = vmatprep.subr.mxu0 0.0
        %599 = vmatpush1.msra.mxu0 0.0
        %600 = vmatprep.subr.mxu0 0.0
        %601 = vmatpush1.msra.mxu0 0.0
        %602 = vmatprep.mubr.f32.mxu0 0.0
        %603 = vmatmul.mubr.f32.gmra.mrb[0].mxu0 %v514
        %v604 = vpop.f32.mrb[0].mxu0
        %v605 = vadd.f32 %v536, %v604
        %v606 = vpop.f32.mrb[0].mxu0
        %607 = vmatprep.mubr.f32.mxu0 0.0
        %608 = vmatmul.mubr.f32.gmra.mrb[0].mxu0 %v515
        %v609 = vpop.f32.mrb[0].mxu0
        %v610 = vadd.f32 %v536, %v609
        %v611 = vpop.f32.mrb[0].mxu0
        %612 = vdwg.mxu0
        %v613 = vmax.f32 %v605, 0.0
        %v614 = vmax.f32 %v610, 0.0
        %v615 = vld [vmem:[#allocation8] sm:$0xff]
        %v616 = vld [vmem:[#allocation8 + $0x8] sm:$0xff]
        %v617 = vld [vmem:[#allocation8 + $0x10] sm:$0xff]
        %v618 = vld [vmem:[#allocation8 + $0x18] sm:$0xff]
        %v619 = vld [vmem:[#allocation8 + $0x20] sm:$0xff]
        %v620 = vld [vmem:[#allocation8 + $0x28] sm:$0xff]
        %v621 = vld [vmem:[#allocation8 + $0x30] sm:$0xff]
        %v622 = vld [vmem:[#allocation8 + $0x38] sm:$0xff]
        %v623 = vld [vmem:[#allocation8 + $0x40] sm:$0xff]
        %v624 = vld [vmem:[#allocation8 + $0x48] sm:$0xff]
        %v625 = vld [vmem:[#allocation8 + $0x50] sm:$0xff]
        %v626 = vld [vmem:[#allocation8 + $0x58] sm:$0xff]
        %v627 = vld [vmem:[#allocation8 + $0x60] sm:$0xff]
        %v628 = vld [vmem:[#allocation8 + $0x68] sm:$0xff]
        %v629 = vld [vmem:[#allocation8 + $0x70] sm:$0xff]
        %v630 = vld [vmem:[#allocation8 + $0x78] sm:$0xff]
        %v632 = vlaneseq
        %v633 = vshrl.u32 %v632, 7
        %v634 = vsub.s32 0, %v633
        %v635 = vrot.slane %v415, %v634
        %637 = vmatprep.subr.mxu0 0.0
        %638 = vmatpush1.msra.mxu0 %v615
        %639 = vmatprep.subr.mxu0 0.0
        %640 = vmatpush1.msra.mxu0 %v616
        %641 = vmatprep.subr.mxu0 0.0
        %642 = vmatpush1.msra.mxu0 %v617
        %643 = vmatprep.subr.mxu0 0.0
        %644 = vmatpush1.msra.mxu0 %v618
        %645 = vmatprep.subr.mxu0 0.0
        %646 = vmatpush1.msra.mxu0 %v619
        %647 = vmatprep.subr.mxu0 0.0
        %648 = vmatpush1.msra.mxu0 %v620
        %649 = vmatprep.subr.mxu0 0.0
        %650 = vmatpush1.msra.mxu0 %v621
        %651 = vmatprep.subr.mxu0 0.0
        %652 = vmatpush1.msra.mxu0 %v622
        %653 = vmatprep.subr.mxu0 0.0
        %654 = vmatpush1.msra.mxu0 %v623
        %655 = vmatprep.subr.mxu0 0.0
        %656 = vmatpush1.msra.mxu0 %v624
        %657 = vmatprep.subr.mxu0 0.0
        %658 = vmatpush1.msra.mxu0 %v625
        %659 = vmatprep.subr.mxu0 0.0
        %660 = vmatpush1.msra.mxu0 %v626
        %661 = vmatprep.subr.mxu0 0.0
        %662 = vmatpush1.msra.mxu0 %v627
        %663 = vmatprep.subr.mxu0 0.0
        %664 = vmatpush1.msra.mxu0 %v628
        %665 = vmatprep.subr.mxu0 0.0
        %666 = vmatpush1.msra.mxu0 %v629
        %667 = vmatprep.subr.mxu0 0.0
        %668 = vmatpush1.msra.mxu0 %v630
        %669 = vmatprep.subr.mxu0 0.0
        %670 = vmatpush1.msra.mxu0 0.0
        %671 = vmatprep.subr.mxu0 0.0
        %672 = vmatpush1.msra.mxu0 0.0
        %673 = vmatprep.subr.mxu0 0.0
        %674 = vmatpush1.msra.mxu0 0.0
        %675 = vmatprep.subr.mxu0 0.0
        %676 = vmatpush1.msra.mxu0 0.0
        %677 = vmatprep.subr.mxu0 0.0
        %678 = vmatpush1.msra.mxu0 0.0
        %679 = vmatprep.subr.mxu0 0.0
        %680 = vmatpush1.msra.mxu0 0.0
        %681 = vmatprep.subr.mxu0 0.0
        %682 = vmatpush1.msra.mxu0 0.0
        %683 = vmatprep.subr.mxu0 0.0
        %684 = vmatpush1.msra.mxu0 0.0
        %685 = vmatprep.subr.mxu0 0.0
        %686 = vmatpush1.msra.mxu0 0.0
        %687 = vmatprep.subr.mxu0 0.0
        %688 = vmatpush1.msra.mxu0 0.0
        %689 = vmatprep.subr.mxu0 0.0
        %690 = vmatpush1.msra.mxu0 0.0
        %691 = vmatprep.subr.mxu0 0.0
        %692 = vmatpush1.msra.mxu0 0.0
        %693 = vmatprep.subr.mxu0 0.0
        %694 = vmatpush1.msra.mxu0 0.0
        %695 = vmatprep.subr.mxu0 0.0
        %696 = vmatpush1.msra.mxu0 0.0
        %697 = vmatprep.subr.mxu0 0.0
        %698 = vmatpush1.msra.mxu0 0.0
        %699 = vmatprep.subr.mxu0 0.0
        %700 = vmatpush1.msra.mxu0 0.0
        %701 = vmatprep.mubr.f32.mxu0 0.0
        %702 = vmatmul.mubr.f32.gmra.mrb[0].mxu0 %v613
        %v703 = vpop.f32.mrb[0].mxu0
        %v704 = vadd.f32 %v635, %v703
        %v705 = vpop.f32.mrb[0].mxu0
        %706 = vmatprep.mubr.f32.mxu0 0.0
        %707 = vmatmul.mubr.f32.gmra.mrb[0].mxu0 %v614
        %v708 = vpop.f32.mrb[0].mxu0
        %v709 = vadd.f32 %v635, %v708
        %v710 = vpop.f32.mrb[0].mxu0
        %711 = vdwg.mxu0
        %v712 = vmax.f32 %v704, 0.0
        %v713 = vmax.f32 %v709, 0.0
        %v714 = vld [vmem:[#allocation10] sm:$0xff]
        %v715 = vld [vmem:[#allocation10 + $0x8] sm:$0xff]
        %v716 = vld [vmem:[#allocation10 + $0x10] sm:$0xff]
        %v717 = vld [vmem:[#allocation10 + $0x18] sm:$0xff]
        %v718 = vld [vmem:[#allocation10 + $0x20] sm:$0xff]
        %v719 = vld [vmem:[#allocation10 + $0x28] sm:$0xff]
        %v720 = vld [vmem:[#allocation10 + $0x30] sm:$0xff]
        %v721 = vld [vmem:[#allocation10 + $0x38] sm:$0xff]
        %v722 = vld [vmem:[#allocation10 + $0x40] sm:$0xff]
        %v723 = vld [vmem:[#allocation10 + $0x48] sm:$0xff]
        %v724 = vld [vmem:[#allocation10 + $0x50] sm:$0xff]
        %v725 = vld [vmem:[#allocation10 + $0x58] sm:$0xff]
        %v726 = vld [vmem:[#allocation10 + $0x60] sm:$0xff]
        %v727 = vld [vmem:[#allocation10 + $0x68] sm:$0xff]
        %v728 = vld [vmem:[#allocation10 + $0x70] sm:$0xff]
        %v729 = vld [vmem:[#allocation10 + $0x78] sm:$0xff]
        %v731 = vlaneseq
        %v732 = vshrl.u32 %v731, 7
        %v733 = vsub.s32 0, %v732
        %v734 = vrot.slane %v416, %v733
        %736 = vmatprep.subr.mxu0 0.0
        %737 = vmatpush1.msra.mxu0 %v714
        %738 = vmatprep.subr.mxu0 0.0
        %739 = vmatpush1.msra.mxu0 %v715
        %740 = vmatprep.subr.mxu0 0.0
        %741 = vmatpush1.msra.mxu0 %v716
        %742 = vmatprep.subr.mxu0 0.0
        %743 = vmatpush1.msra.mxu0 %v717
        %744 = vmatprep.subr.mxu0 0.0
        %745 = vmatpush1.msra.mxu0 %v718
        %746 = vmatprep.subr.mxu0 0.0
        %747 = vmatpush1.msra.mxu0 %v719
        %748 = vmatprep.subr.mxu0 0.0
        %749 = vmatpush1.msra.mxu0 %v720
        %750 = vmatprep.subr.mxu0 0.0
        %751 = vmatpush1.msra.mxu0 %v721
        %752 = vmatprep.subr.mxu0 0.0
        %753 = vmatpush1.msra.mxu0 %v722
        %754 = vmatprep.subr.mxu0 0.0
        %755 = vmatpush1.msra.mxu0 %v723
        %756 = vmatprep.subr.mxu0 0.0
        %757 = vmatpush1.msra.mxu0 %v724
        %758 = vmatprep.subr.mxu0 0.0
        %759 = vmatpush1.msra.mxu0 %v725
        %760 = vmatprep.subr.mxu0 0.0
        %761 = vmatpush1.msra.mxu0 %v726
        %762 = vmatprep.subr.mxu0 0.0
        %763 = vmatpush1.msra.mxu0 %v727
        %764 = vmatprep.subr.mxu0 0.0
        %765 = vmatpush1.msra.mxu0 %v728
        %766 = vmatprep.subr.mxu0 0.0
        %767 = vmatpush1.msra.mxu0 %v729
        %768 = vmatprep.subr.mxu0 0.0
        %769 = vmatpush1.msra.mxu0 0.0
        %770 = vmatprep.subr.mxu0 0.0
        %771 = vmatpush1.msra.mxu0 0.0
        %772 = vmatprep.subr.mxu0 0.0
        %773 = vmatpush1.msra.mxu0 0.0
        %774 = vmatprep.subr.mxu0 0.0
        %775 = vmatpush1.msra.mxu0 0.0
        %776 = vmatprep.subr.mxu0 0.0
        %777 = vmatpush1.msra.mxu0 0.0
        %778 = vmatprep.subr.mxu0 0.0
        %779 = vmatpush1.msra.mxu0 0.0
        %780 = vmatprep.subr.mxu0 0.0
        %781 = vmatpush1.msra.mxu0 0.0
        %782 = vmatprep.subr.mxu0 0.0
        %783 = vmatpush1.msra.mxu0 0.0
        %784 = vmatprep.subr.mxu0 0.0
        %785 = vmatpush1.msra.mxu0 0.0
        %786 = vmatprep.subr.mxu0 0.0
        %787 = vmatpush1.msra.mxu0 0.0
        %788 = vmatprep.subr.mxu0 0.0
        %789 = vmatpush1.msra.mxu0 0.0
        %790 = vmatprep.subr.mxu0 0.0
        %791 = vmatpush1.msra.mxu0 0.0
        %792 = vmatprep.subr.mxu0 0.0
        %793 = vmatpush1.msra.mxu0 0.0
        %794 = vmatprep.subr.mxu0 0.0
        %795 = vmatpush1.msra.mxu0 0.0
        %796 = vmatprep.subr.mxu0 0.0
        %797 = vmatpush1.msra.mxu0 0.0
        %798 = vmatprep.subr.mxu0 0.0
        %799 = vmatpush1.msra.mxu0 0.0
        %800 = vmatprep.mubr.f32.mxu0 0.0
        %801 = vmatmul.mubr.f32.gmra.mrb[0].mxu0 %v712
        %v802 = vpop.f32.mrb[0].mxu0
        %v803 = vadd.f32 %v734, %v802
        %v804 = vpop.f32.mrb[0].mxu0
        %805 = vmatprep.mubr.f32.mxu0 0.0
        %806 = vmatmul.mubr.f32.gmra.mrb[0].mxu0 %v713
        %v807 = vpop.f32.mrb[0].mxu0
        %v808 = vadd.f32 %v734, %v807
        %v809 = vpop.f32.mrb[0].mxu0
        %810 = vdwg.mxu0
        %v811 = vsub.f32 0.0, %v803
        %v812 = vsub.f32 0.0, %v808
        %v813 = vmul.f32 %v811, 1.442695
        %v814 = vpow.pop %v813
        %v815 = vmul.f32 %v812, 1.442695
        %v816 = vpow.pop %v815
        %v817 = vadd.f32 %v814, 1.0
        %v818 = vadd.f32 %v816, 1.0
        %v819 = vrcp.pop %v817
        %v820 = vrcp.pop %v818
        %821 = vst [vmem:[%s408] sm:$0xff] %v819
        %822 = vst [vmem:[%s408 + $0x8] sm:$0xff] %v820
        %s823 = sand.u32 %s230, 1
        %s824 = scalar_lea.sflag [#allocation4], %s823
        %s825 = sand.u32 %s230, 1
        %s826 = smul.addr %s825, 16
        %s827 = scalar_lea.vmem [#allocation11], %s826
        // Predicated region
        $region77: #{tpu_custom_call.1} parent=55 // pred_check
          %p828 = pneg %p240
        $region78: #{tpu_custom_call.1} parent=55 // pred_check_branch
          %830 = sbr.rel (%p828) target = $region80
        $region79: #{tpu_custom_call.1} parent=55 // pred_region
          %s831 = smul.u32 2, %s28
          %s833 = ssub.s32 256, 256
          %834 = vsyncadd %s824, %s833
          %s835 = smul.addr %s831, 128
          %s836 = scalar_lea.hbm %s9, %s835
          %s837 = sshll.u32 %s827, 4
          %s838 = int_to_ptr.vmem [resolvable:$true] %s837
          %843 = dma.vmem_to_hbm [thread:$0]  %s838, 256, %s836, %s824, 128, 128, 8
        $region80: #{tpu_custom_call.1} parent=55 // pred_fallthru
          _
      $region56: #{tpu_custom_call.1} parent=5 // pred_fallthru
        _
      %p844 = scmp.le.s32.totalorder 2, %s23
      // Predicated region
      $region81: #{tpu_custom_call.1} parent=5 // pred_check
        %p845 = pneg %p844
      $region82: #{tpu_custom_call.1} parent=5 // pred_check_branch
        %847 = sbr.rel (%p845) target = $region84
      $region83: #{tpu_custom_call.1} parent=5 // pred_region
        %s848 = ssub.s32 %s23, 2
        // Predicated region
        $region85: #{tpu_custom_call.1} parent=83 // pred_check
          %p849 = pneg %p246
        $region86: #{tpu_custom_call.1} parent=83 // pred_check_branch
          %851 = sbr.rel (%p849) target = $region88
        $region87: #{tpu_custom_call.1} parent=83 // pred_region
          %s852 = sand.u32 %s231, 1
          %s853 = scalar_lea.sflag [#allocation4], %s852
          %s854 = sand.u32 %s231, 1
          %s855 = smul.addr %s854, 16
          %s856 = scalar_lea.vmem [#allocation11], %s855
          %857 = dma.done %s853, 256
        $region88: #{tpu_custom_call.1} parent=83 // pred_fallthru
          _
      $region84: #{tpu_custom_call.1} parent=5 // pred_fallthru
        _
    $region6: #{tpu_custom_call.1} parent=1 // loop_footer
      %s27 = sadd.s32 1, %s23
    $region7: #{tpu_custom_call.1} parent=1 // loop_footer_branch
      %22 = sbr.rel target = $region3
    $region8: #{tpu_custom_call.1} parent=1 // loop_exit
      _
    %858 = vsyncpa [#allocation3], 1
    %s859 = scalar_lea.sflag [#allocation3], 1
    %860 = vsyncpa %s859, 1
    %861 = vsyncpa [#allocation6], 1
    %862 = vsyncpa [#allocation9], 1
    %863 = vsyncpa [#allocation4], 1
    %s864 = scalar_lea.sflag [#allocation4], 1
    %865 = vsyncpa %s864, 1

</llo_original>
